<compile_context>
chip_gen: v6e
topology: v6e:2x2x1
jax: 0.10.0
libtpu: 0.0.40
codegen_flags: <defaults>
</compile_context>

<pallas_src>
import functools

import jax
import jax.numpy as jnp
from jax import lax
from jax.experimental import pallas as pl
from jax.experimental.pallas import tpu as pltpu

_EPS = 1e-30       # torch uses 1e-40, which is subnormal in f32 (flushed to 0 on TPU)
_NEG_BIG = -1e30   # bias for padded vocab columns -> they never affect the softmax


# ----------------------------------------------------------------------------
# Kernels
# ----------------------------------------------------------------------------
def _pgen_stats_kernel(x_ref, wp_ref, bp_ref, wg_ref, bg_ref,
                       m_ref, l_ref, g_ref, *, inv_temp, w_dtype):
    """Pointer-gen pass 0 (stats).  grid = (vocab_tile, batch, time_tile).

    x_ref : (1, tm, H) f32     wp_ref : (H, tv) w_dtype    bp_ref : (1, tv) f32
    wg_ref: (1, H) f32         bg_ref : (1, 1) f32 in SMEM
    m_ref/l_ref : (1, 1, tm, 1) blocks of (n_v, B, T, 1)   g_ref : (1, tm, 1)
    """
    x = x_ref[0]                                                    # (tm, H)
    xm = x if w_dtype == jnp.float32 else x.astype(w_dtype)
    lt = (jnp.dot(xm, wp_ref[...], preferred_element_type=jnp.float32)
          + bp_ref[...]) * inv_temp                                 # (tm, tv)
    m = jnp.max(lt, axis=-1, keepdims=True)
    m_ref[0, 0] = m
    l_ref[0, 0] = jnp.sum(jnp.exp(lt - m), axis=-1, keepdims=True)
    # p_gen depends only on (b, t); recomputing it per vocab tile costs tm*H
    # MACs (~0.1% of the projection matmul), so the write is idempotent and the
    # kernel needs no cross-iteration state.
    pg = jnp.sum(x * wg_ref[...], axis=-1, keepdims=True) + bg_ref[0, 0]
    g_ref[0] = jax.nn.sigmoid(pg)


def _pgen_out_kernel(x_ref, attn_ref, enc_ref, wp_ref, bp_ref,
                     m_ref, cg_ref, cc_ref, out_ref, oh_ref,
                     *, inv_temp, tv, w_dtype):
    """Pointer-gen pass 1 (output).  grid = (vocab_tile, batch, time_tile).

    attn_ref holds the *precomputed* softmax(attn/temp) tile (1, tm, S).
    m_ref  : per-row logit max            cg_ref : p_gen / l
    cc_ref : 1 - p_gen                    oh_ref : (S, tv) f32 scratch (one-hot)
    """
    v = pl.program_id(0)
    t = pl.program_id(2)

    # The one-hot depends only on (b, v); with the time-tile axis innermost it
    # only needs rebuilding at t == 0 (that axis is marked "arbitrary").
    @pl.when(t == 0)
    def _build_one_hot():
        idx = enc_ref[0, 0]                                         # (S,) int32
        col = lax.broadcasted_iota(jnp.int32, oh_ref.shape, 1)      # (S, tv)
        oh_ref[...] = ((idx[:, None] - v * tv) == col).astype(jnp.float32)

    x = x_ref[0]
    xm = x if w_dtype == jnp.float32 else x.astype(w_dtype)
    lt = (jnp.dot(xm, wp_ref[...], preferred_element_type=jnp.float32)
          + bp_ref[...]) * inv_temp                                 # (tm, tv)

    vocab_part = jnp.exp(lt - m_ref[0]) * cg_ref[0]                 # p_gen*softmax
    scatter = jnp.dot(attn_ref[0], oh_ref[...],
                      preferred_element_type=jnp.float32) * cc_ref[0]
    out_ref[0] = jnp.log(vocab_part + scatter + _EPS)


def _logsm_stats_kernel(x_ref, wp_ref, bp_ref, m_ref, l_ref, *, w_dtype):
    """pointer_gen=False pass 0.  grid = (vocab_tile, row_tile)."""
    x = x_ref[...]
    xm = x if w_dtype == jnp.float32 else x.astype(w_dtype)
    lt = (jnp.dot(xm, wp_ref[...], preferred_element_type=jnp.float32)
          + bp_ref[...])
    m = jnp.max(lt, axis=-1, keepdims=True)
    m_ref[0] = m
    l_ref[0] = jnp.sum(jnp.exp(lt - m), axis=-1, keepdims=True)


def _logsm_out_kernel(x_ref, wp_ref, bp_ref, lse_ref, out_ref, *, w_dtype):
    """pointer_gen=False pass 1: log_softmax = logits - lse."""
    x = x_ref[...]
    xm = x if w_dtype == jnp.float32 else x.astype(w_dtype)
    lt = (jnp.dot(xm, wp_ref[...], preferred_element_type=jnp.float32)
          + bp_ref[...])
    out_ref[...] = lt - lse_ref[...]


# ----------------------------------------------------------------------------
# Tiling / VMEM helpers
# ----------------------------------------------------------------------------
def _round_up(a, q):
    return -(-a // q) * q


def _pick_tile(total, target, quantum):
    """Largest multiple of `quantum` <= target that divides `total`, else `total`."""
    if total <= target:
        return total
    q = (min(target, total) // quantum) * quantum
    while q >= quantum:
        if total % q == 0:
            return q
        q -= quantum
    return total


def _physical_vmem_bytes():
    try:
        return int(pltpu.get_tpu_info().vmem_capacity_bytes)
    except Exception:
        return 64 * 2 ** 20  # conservative (v7x-sized) fallback


def _vmem_limit_bytes(block_nbytes, scratch_nbytes=0):
    est = 2 * int(sum(block_nbytes)) + int(scratch_nbytes)   # double-buffered blocks
    cap = max(32 * 2 ** 20, _physical_vmem_bytes() - 16 * 2 ** 20)  # Mosaic headroom
    return int(min(cap, max(32 * 2 ** 20, 2 * est)))


def _choose_tv(vocab, hidden, w_bytes):
    """Vocab tile: multiple of 128, weight double-buffer <= ~1/4 of usable VMEM."""
    budget = max(8 * 2 ** 20, (_physical_vmem_bytes() - 16 * 2 ** 20) // 4)
    tv = 2048
    while tv > 128 and 2 * hidden * tv * w_bytes > budget:
        tv //= 2
    return max(128, min(tv, _round_up(vocab, 128)))


# ----------------------------------------------------------------------------
# Wrapper
# ----------------------------------------------------------------------------
class GeneratorPallas:
    """Pallas port of the PyTorch Generator module (forward pass)."""

    def __init__(self, hidden_size, vocab, pointer_gen, key, *,
                 weight_dtype=jnp.bfloat16, tv=None):
        self.hidden_size = int(hidden_size)
        self.vocab = int(vocab)
        self.pointer_gen = bool(pointer_gen)
        self.weight_dtype = weight_dtype
        wb = jnp.dtype(weight_dtype).itemsize
        self.tv = int(tv) if tv is not None else _choose_tv(self.vocab,
                                                            self.hidden_size, wb)
        self.v_pad = _round_up(self.vocab, self.tv)
        self.n_v = self.v_pad // self.tv

        k1, k2, k3, k4 = jax.random.split(key, 4)
        bound = 1.0 / (self.hidden_size ** 0.5)
        # nn.Linear(hidden, vocab): weight (V, H), bias (V,). Stored transposed.
        w = jax.random.uniform(k1, (self.hidden_size, self.vocab),
                               jnp.float32, -bound, bound)
        b = jax.random.uniform(k2, (self.vocab,), jnp.float32, -bound, bound)
        self.w_proj_f32, self.b_proj_f32 = w, b          # for the pure-JAX reference
        pad = self.v_pad - self.vocab
        # Padded weight columns are zeros; padded bias columns are very negative
        # so the padded logits never contribute to the softmax stats.
        self.w_proj = jnp.pad(w, ((0, 0), (0, pad))).astype(weight_dtype)
        self.b_proj = jnp.pad(b, (0, pad),
                              constant_values=_NEG_BIG).reshape(1, self.v_pad)
        # nn.Linear(hidden, 1)
        self.w_pgen = jax.random.uniform(k3, (1, self.hidden_size),
                                         jnp.float32, -bound, bound)
        self.b_pgen = jax.random.uniform(k4, (1, 1), jnp.float32, -bound, bound)

    # ------------------------------------------------------------------ call
    def __call__(self, x, attn_dist=None, enc_batch_extend_vocab=None,
                 temp=1.0, *, tm=None):
        B, T, H = x.shape
        V, V_pad, tv, n_v = self.vocab, self.v_pad, self.tv, self.n_v
        wb = jnp.dtype(self.weight_dtype).itemsize
        wd = self.weight_dtype

        if not self.pointer_gen:
            # ----------------------- plain log_softmax(proj(x)) ------------
            M = B * T
            x2d = x.reshape(M, H)
            tm_ = tm if tm is not None else _pick_tile(M, 256, 8)
            n_r = M // tm_

            stats = functools.partial(_logsm_stats_kernel, w_dtype=wd)
            blk0 = [tm_ * H * 4, H * tv * wb, tv * 4, 2 * tm_ * 512]
            m_part, l_part = pl.pallas_call(
                stats,
                out_shape=(jax.ShapeDtypeStruct((n_v, M, 1), jnp.float32),
                           jax.ShapeDtypeStruct((n_v, M, 1), jnp.float32)),
                grid_spec=pltpu.PrefetchScalarGridSpec(
                    num_scalar_prefetch=0, grid=(n_v, n_r),
                    in_specs=[
                        pl.BlockSpec((tm_, H), lambda v, r: (r, 0)),
                        pl.BlockSpec((H, tv), lambda v, r: (0, v)),
                        pl.BlockSpec((1, tv), lambda v, r: (0, v)),
                    ],
                    out_specs=[
                        pl.BlockSpec((1, tm_, 1), lambda v, r: (v, r, 0)),
                        pl.BlockSpec((1, tm_, 1), lambda v, r: (v, r, 0)),
                    ]),
                compiler_params=pltpu.CompilerParams(
                    dimension_semantics=("parallel", "parallel"),
                    vmem_limit_bytes=_vmem_limit_bytes(blk0)),
            )(x2d, self.w_proj, self.b_proj)

            m = jnp.max(m_part, axis=0)                               # (M, 1)
            l = jnp.sum(l_part * jnp.exp(m_part - m), axis=0)         # (M, 1)
            lse = m + jnp.log(l)

            outk = functools.partial(_logsm_out_kernel, w_dtype=wd)
            blk1 = [tm_ * H * 4, H * tv * wb, tv * 4, tm_ * 512, tm_ * tv * 4]
            out2d = pl.pallas_call(
                outk,
                out_shape=jax.ShapeDtypeStruct((M, V_pad), jnp.float32),
                grid_spec=pltpu.PrefetchScalarGridSpec(
                    num_scalar_prefetch=0, grid=(n_v, n_r),
                    in_specs=[
                        pl.BlockSpec((tm_, H), lambda v, r: (r, 0)),
                        pl.BlockSpec((H, tv), lambda v, r: (0, v)),
                        pl.BlockSpec((1, tv), lambda v, r: (0, v)),
                        pl.BlockSpec((tm_, 1), lambda v, r: (r, 0)),
                    ],
                    out_specs=pl.BlockSpec((tm_, tv), lambda v, r: (r, v))),
                compiler_params=pltpu.CompilerParams(
                    dimension_semantics=("parallel", "parallel"),
                    vmem_limit_bytes=_vmem_limit_bytes(blk1)),
            )(x2d, self.w_proj, self.b_proj, lse)
            return out2d[:, :V].reshape(B, T, V)

        # --------------------------- pointer_gen=True ----------------------
        S = attn_dist.shape[2]
        tm_ = tm if tm is not None else _pick_tile(T, 256, 8)
        n_t = T // tm_
        inv_temp = 1.0 / float(temp)

        # The attention softmax depends only on (b, t) and is O(B*T*S); doing it
        # once in the wrapper avoids recomputing it for every vocab tile.
        attn_sm = jax.nn.softmax(attn_dist.astype(jnp.float32) * inv_temp, axis=-1)
        enc3 = enc_batch_extend_vocab.astype(jnp.int32).reshape(B, 1, S)

        # ---- pass 0: per-(row-tile, vocab-tile) partial softmax stats + p_gen
        stats = functools.partial(_pgen_stats_kernel, inv_temp=inv_temp, w_dtype=wd)
        blk0 = [tm_ * H * 4, H * tv * wb, tv * 4, H * 4, 3 * tm_ * 512]
        m_part, l_part, p_gen = pl.pallas_call(
            stats,
            out_shape=(jax.ShapeDtypeStruct((n_v, B, T, 1), jnp.float32),
                       jax.ShapeDtypeStruct((n_v, B, T, 1), jnp.float32),
                       jax.ShapeDtypeStruct((B, T, 1), jnp.float32)),
            grid_spec=pltpu.PrefetchScalarGridSpec(
                num_scalar_prefetch=0, grid=(n_v, B, n_t),
                in_specs=[
                    pl.BlockSpec((1, tm_, H), lambda v, b, t: (b, t, 0)),
                    pl.BlockSpec((H, tv), lambda v, b, t: (0, v)),
                    pl.BlockSpec((1, tv), lambda v, b, t: (0, v)),
                    pl.BlockSpec((1, H), lambda v, b, t: (0, 0)),
                    pl.BlockSpec(memory_space=pltpu.MemorySpace.SMEM),
                ],
                out_specs=[
                    pl.BlockSpec((1, 1, tm_, 1), lambda v, b, t: (v, b, t, 0)),
                    pl.BlockSpec((1, 1, tm_, 1), lambda v, b, t: (v, b, t, 0)),
                    pl.BlockSpec((1, tm_, 1), lambda v, b, t: (b, t, 0)),
                ]),
            compiler_params=pltpu.CompilerParams(
                # p_gen is revisited across v -> keep v "arbitrary" here.
                dimension_semantics=("arbitrary", "parallel", "parallel"),
                vmem_limit_bytes=_vmem_limit_bytes(blk0)),
        )(x, self.w_proj, self.b_proj, self.w_pgen, self.b_pgen)

        # ---- combine partial stats into per-row softmax constants (tiny) ----
        m = jnp.max(m_part, axis=0)                                   # (B, T, 1)
        l = jnp.sum(l_part * jnp.exp(m_part - m), axis=0)             # (B, T, 1)
        coef_gen = p_gen / l            # p_gen * softmax(lt) = coef_gen*exp(lt-m)
        coef_copy = 1.0 - p_gen

        # ---- pass 1: softmax tile + pointer scatter + log -------------------
        outk = functools.partial(_pgen_out_kernel, inv_temp=inv_temp, tv=tv,
                                 w_dtype=wd)
        blk1 = [tm_ * H * 4, tm_ * S * 4, S * 4, H * tv * wb, tv * 4,
                3 * tm_ * 512, tm_ * tv * 4]
        scr = _round_up(S, 8) * tv * 4
        out = pl.pallas_call(
            outk,
            out_shape=jax.ShapeDtypeStruct((B, T, V_pad), jnp.float32),
            grid_spec=pltpu.PrefetchScalarGridSpec(
                num_scalar_prefetch=0, grid=(n_v, B, n_t),
                in_specs=[
                    pl.BlockSpec((1, tm_, H), lambda v, b, t: (b, t, 0)),
                    pl.BlockSpec((1, tm_, S), lambda v, b, t: (b, t, 0)),
                    pl.BlockSpec((1, 1, S), lambda v, b, t: (b, 0, 0)),
                    pl.BlockSpec((H, tv), lambda v, b, t: (0, v)),
                    pl.BlockSpec((1, tv), lambda v, b, t: (0, v)),
                    pl.BlockSpec((1, tm_, 1), lambda v, b, t: (b, t, 0)),
                    pl.BlockSpec((1, tm_, 1), lambda v, b, t: (b, t, 0)),
                    pl.BlockSpec((1, tm_, 1), lambda v, b, t: (b, t, 0)),
                ],
                out_specs=pl.BlockSpec((1, tm_, tv), lambda v, b, t: (b, t, v)),
                scratch_shapes=[pltpu.VMEM((S, tv), jnp.float32)]),
            compiler_params=pltpu.CompilerParams(
                # one-hot cache is rebuilt at t == 0 -> t must stay "arbitrary".
                dimension_semantics=("parallel", "parallel", "arbitrary"),
                vmem_limit_bytes=_vmem_limit_bytes(blk1, scr)),
        )(x, attn_sm, enc3, self.w_proj, self.b_proj, m, coef_gen, coef_copy)
        return out[:, :, :V]

    # --------------------------------------------------------------- reference
    def reference(self, x, attn_dist=None, enc_batch_extend_vocab=None, temp=1.0):
        """Pure-JAX f32 reference (faithful to the torch module)."""
        logit = jnp.einsum("bth,hv->btv", x, self.w_proj_f32) + self.b_proj_f32
        if not self.pointer_gen:
            return jax.nn.log_softmax(logit, axis=-1)
        p_gen = jax.nn.sigmoid(
            jnp.einsum("bth,h->bt", x, self.w_pgen[0])[..., None]
            + self.b_pgen[0, 0])
        vocab_dist = jax.nn.softmax(logit / temp, axis=-1)
        vocab_dist_ = p_gen * vocab_dist
        attn_sm = jax.nn.softmax(attn_dist / temp, axis=-1)
        attn_dist_ = (1.0 - p_gen) * attn_sm
        one_hot = jax.nn.one_hot(enc_batch_extend_vocab, self.vocab,
                                 dtype=jnp.float32)                  # (B, S, V)
        scatter = jnp.einsum("bts,bsv->btv", attn_dist_, one_hot)
        return jnp.log(vocab_dist_ + scatter + _EPS)


if __name__ == "__main__":
    # V deliberately NOT a multiple of 128 so the vocab-padding path is
    # exercised; tv=128 forces 2 vocab tiles so the split-softmax machinery and
    # the one-hot cache are exercised too.
    B, T, H, V, S = 2, 8, 32, 250, 16

    key = jax.random.PRNGKey(0)
    k_param, k_x, k_attn, k_enc = jax.random.split(key, 4)

    x = jax.random.normal(k_x, (B, T, H), dtype=jnp.float32)
    attn = jax.random.normal(k_attn, (B, T, S), dtype=jnp.float32)
    enc_ids = jax.random.randint(k_enc, (B, S), 0, V, dtype=jnp.int32)

    # 1) pointer_gen=True with f32 weights: tight structural check.
    gen32 = GeneratorPallas(H, V, True, k_param, weight_dtype=jnp.float32, tv=128)
    out32 = jax.block_until_ready(gen32(x, attn, enc_ids, temp=1.0))
    ref = gen32.reference(x, attn, enc_ids, temp=1.0)
    assert out32.shape == (B, T, V)
    assert jnp.allclose(out32, ref, atol=2e-3, rtol=2e-3), "mismatch (pointer f32)"

    # 2) pointer_gen=True with bf16 weights (default fast path): looser tol.
    gen16 = GeneratorPallas(H, V, True, k_param, tv=128)
    out16 = jax.block_until_ready(gen16(x, attn, enc_ids, temp=1.0))
    assert jnp.allclose(out16, ref, atol=3e-2, rtol=3e-2), "mismatch (pointer bf16)"

    # 3) pointer_gen=False path (plain log_softmax), f32 weights.
    gen_np = GeneratorPallas(H, V, False, k_param, weight_dtype=jnp.float32, tv=128)
    out_np = jax.block_until_ready(gen_np(x))
    ref_np = gen_np.reference(x)
    assert out_np.shape == (B, T, V)
    assert jnp.allclose(out_np, ref_np, atol=1e-3, rtol=1e-3), "mismatch (no pointer)"

    print("KERNEL_OK")
</pallas_src>

<mosaic_0001>
module attributes {stable_mosaic.version = 11 : i64} {
  func.func @_pgen_stats_kernel(%arg0: i32, %arg1: i32, %arg2: i32, %arg3: memref<1x8x32xf32, #tpu.memory_space<vmem>>, %arg4: memref<32x128xf32, #tpu.memory_space<vmem>>, %arg5: memref<1x128xf32, #tpu.memory_space<vmem>>, %arg6: memref<1x32xf32, #tpu.memory_space<vmem>>, %arg7: memref<1x1xf32, #tpu.memory_space<smem>>, %arg8: memref<1x1x8x1xf32, #tpu.memory_space<vmem>>, %arg9: memref<1x1x8x1xf32, #tpu.memory_space<vmem>>, %arg10: memref<1x8x1xf32, #tpu.memory_space<vmem>>) attributes {dimension_semantics = [#tpu.dimension_semantics<arbitrary>, #tpu.dimension_semantics<parallel>, #tpu.dimension_semantics<parallel>], iteration_bounds = array<i64: 2, 2, 1>, scalar_prefetch = 0 : i64, scratch_operands = 0 : i64, tpu.core_type = #tpu.core_type<tc>, window_params = [{transform_indices = @transform_0, window_bounds = array<i64: 1, 8, 32>}, {transform_indices = @transform_1, window_bounds = array<i64: 32, 128>}, {transform_indices = @transform_2, window_bounds = array<i64: 1, 128>}, {pipeline_mode = #tpu.pipeline_mode<synchronous>, transform_indices = @transform_3, window_bounds = array<i64: 1, 32>}, {transform_indices = @transform_4, window_bounds = array<i64: 1, 1>}, {transform_indices = @transform_5, window_bounds = array<i64: 1, 1, 8, 1>}, {transform_indices = @transform_6, window_bounds = array<i64: 1, 1, 8, 1>}, {transform_indices = @transform_7, window_bounds = array<i64: 1, 8, 1>}]} {
    %c0 = arith.constant 0 : index
    %c0_0 = arith.constant 0 : index
    %c0_1 = arith.constant 0 : index
    %0 = vector.load %arg3[%c0, %c0_0, %c0_1] : memref<1x8x32xf32, #tpu.memory_space<vmem>>, vector<1x8x32xf32>
    %1 = vector.shape_cast %0 : vector<1x8x32xf32> to vector<8x32xf32>
    %c0_2 = arith.constant 0 : index
    %c0_3 = arith.constant 0 : index
    %2 = vector.load %arg4[%c0_2, %c0_3] : memref<32x128xf32, #tpu.memory_space<vmem>>, vector<32x128xf32>
    %cst = arith.constant dense<0.000000e+00> : vector<8x128xf32>
    %3 = tpu.matmul %1, %2, %cst {dimension_numbers = #tpu.dot_dimension_numbers<[1], [0], [0], [1], [0, 0, 1, 1], [], []>} : vector<8x32xf32>, vector<32x128xf32>, vector<8x128xf32> -> vector<8x128xf32>
    %c0_4 = arith.constant 0 : index
    %c0_5 = arith.constant 0 : index
    %4 = vector.load %arg5[%c0_4, %c0_5] : memref<1x128xf32, #tpu.memory_space<vmem>>, vector<1x128xf32>
    %5 = vector.broadcast %4 : vector<1x128xf32> to vector<8x128xf32>
    %6 = arith.addf %3, %5 : vector<8x128xf32>
    %cst_6 = arith.constant 1.000000e+00 : f32
    %7 = vector.broadcast %cst_6 : f32 to vector<8x128xf32>
    %8 = arith.mulf %6, %7 : vector<8x128xf32>
    %cst_7 = arith.constant dense<0xFF800000> : vector<8xf32>
    %9 = vector.multi_reduction <maximumf>, %8, %cst_7 [1] : vector<8x128xf32> to vector<8xf32>
    %10 = vector.shape_cast %9 : vector<8xf32> to vector<8x1xf32>
    %c0_8 = arith.constant 0 : index
    %c0_9 = arith.constant 0 : index
    %c0_10 = arith.constant 0 : index
    %c0_11 = arith.constant 0 : index
    %11 = vector.load %arg8[%c0_8, %c0_9, %c0_10, %c0_11] : memref<1x1x8x1xf32, #tpu.memory_space<vmem>>, vector<1x1x8x1xf32>
    %12 = vector.shape_cast %11 : vector<1x1x8x1xf32> to vector<8x1xf32>
    %13 = vector.shape_cast %10 : vector<8x1xf32> to vector<1x1x8x1xf32>
    tpu.vector_store %arg8[%c0_8, %c0_9, %c0_10, %c0_11], %13 {strides = array<i32>} : memref<1x1x8x1xf32, #tpu.memory_space<vmem>>, vector<1x1x8x1xf32>,
    %14 = vector.broadcast %10 : vector<8x1xf32> to vector<8x128xf32>
    %15 = arith.subf %8, %14 : vector<8x128xf32>
    %16 = math.exp %15 : vector<8x128xf32>
    %cst_12 = arith.constant dense<0.000000e+00> : vector<8xf32>
    %17 = vector.multi_reduction <add>, %16, %cst_12 [1] : vector<8x128xf32> to vector<8xf32>
    %18 = vector.shape_cast %17 : vector<8xf32> to vector<8x1xf32>
    %c0_13 = arith.constant 0 : index
    %c0_14 = arith.constant 0 : index
    %c0_15 = arith.constant 0 : index
    %c0_16 = arith.constant 0 : index
    %19 = vector.load %arg9[%c0_13, %c0_14, %c0_15, %c0_16] : memref<1x1x8x1xf32, #tpu.memory_space<vmem>>, vector<1x1x8x1xf32>
    %20 = vector.shape_cast %19 : vector<1x1x8x1xf32> to vector<8x1xf32>
    %21 = vector.shape_cast %18 : vector<8x1xf32> to vector<1x1x8x1xf32>
    tpu.vector_store %arg9[%c0_13, %c0_14, %c0_15, %c0_16], %21 {strides = array<i32>} : memref<1x1x8x1xf32, #tpu.memory_space<vmem>>, vector<1x1x8x1xf32>,
    %c0_17 = arith.constant 0 : index
    %c0_18 = arith.constant 0 : index
    %22 = vector.load %arg6[%c0_17, %c0_18] : memref<1x32xf32, #tpu.memory_space<vmem>>, vector<1x32xf32>
    %23 = vector.broadcast %22 : vector<1x32xf32> to vector<8x32xf32>
    %24 = arith.mulf %1, %23 : vector<8x32xf32>
    %cst_19 = arith.constant dense<0.000000e+00> : vector<8xf32>
    %25 = vector.multi_reduction <add>, %24, %cst_19 [1] : vector<8x32xf32> to vector<8xf32>
    %26 = vector.shape_cast %25 : vector<8xf32> to vector<8x1xf32>
    %c0_20 = arith.constant 0 : index
    %c0_21 = arith.constant 0 : index
    %27 = memref.load %arg7[%c0_20, %c0_21] : memref<1x1xf32, #tpu.memory_space<smem>>
    %28 = vector.broadcast %27 : f32 to vector<8x1xf32>
    %29 = arith.addf %26, %28 : vector<8x1xf32>
    %30 = arith.negf %29 : vector<8x1xf32>
    %31 = math.exp %30 : vector<8x1xf32>
    %cst_22 = arith.constant 1.000000e+00 : f32
    %32 = vector.broadcast %cst_22 : f32 to vector<8x1xf32>
    %33 = arith.addf %32, %31 : vector<8x1xf32>
    %34 = arith.divf %32, %33 : vector<8x1xf32>
    %c0_23 = arith.constant 0 : index
    %c0_24 = arith.constant 0 : index
    %c0_25 = arith.constant 0 : index
    %35 = vector.load %arg10[%c0_23, %c0_24, %c0_25] : memref<1x8x1xf32, #tpu.memory_space<vmem>>, vector<1x8x1xf32>
    %36 = vector.shape_cast %35 : vector<1x8x1xf32> to vector<8x1xf32>
    %37 = vector.shape_cast %34 : vector<8x1xf32> to vector<1x8x1xf32>
    tpu.vector_store %arg10[%c0_23, %c0_24, %c0_25], %37 {strides = array<i32>} : memref<1x8x1xf32, #tpu.memory_space<vmem>>, vector<1x8x1xf32>,
    return
  }
  func.func @transform_0(%arg0: i32, %arg1: i32, %arg2: i32) -> (i32, i32, i32) {
    %c0_i32 = arith.constant 0 : i32
    %c0_i32_0 = arith.constant 0 : i32
    return %arg1, %arg2, %c0_i32 : i32, i32, i32
  }
  func.func @transform_1(%arg0: i32, %arg1: i32, %arg2: i32) -> (i32, i32) {
    %c0_i32 = arith.constant 0 : i32
    %c0_i32_0 = arith.constant 0 : i32
    return %c0_i32, %arg0 : i32, i32
  }
  func.func @transform_2(%arg0: i32, %arg1: i32, %arg2: i32) -> (i32, i32) {
    %c0_i32 = arith.constant 0 : i32
    %c0_i32_0 = arith.constant 0 : i32
    return %c0_i32, %arg0 : i32, i32
  }
  func.func @transform_3(%arg0: i32, %arg1: i32, %arg2: i32) -> (i32, i32) {
    %c0_i32 = arith.constant 0 : i32
    %c0_i32_0 = arith.constant 0 : i32
    %c0_i32_1 = arith.constant 0 : i32
    return %c0_i32, %c0_i32_0 : i32, i32
  }
  func.func @transform_4(%arg0: i32, %arg1: i32, %arg2: i32) -> (i32, i32) {
    %c0_i32 = arith.constant 0 : i32
    %c0_i32_0 = arith.constant 0 : i32
    %c0_i32_1 = arith.constant 0 : i32
    return %c0_i32, %c0_i32_0 : i32, i32
  }
  func.func @transform_5(%arg0: i32, %arg1: i32, %arg2: i32) -> (i32, i32, i32, i32) {
    %c0_i32 = arith.constant 0 : i32
    %c0_i32_0 = arith.constant 0 : i32
    return %arg0, %arg1, %arg2, %c0_i32 : i32, i32, i32, i32
  }
  func.func @transform_6(%arg0: i32, %arg1: i32, %arg2: i32) -> (i32, i32, i32, i32) {
    %c0_i32 = arith.constant 0 : i32
    %c0_i32_0 = arith.constant 0 : i32
    return %arg0, %arg1, %arg2, %c0_i32 : i32, i32, i32, i32
  }
  func.func @transform_7(%arg0: i32, %arg1: i32, %arg2: i32) -> (i32, i32, i32) {
    %c0_i32 = arith.constant 0 : i32
    %c0_i32_0 = arith.constant 0 : i32
    return %arg1, %arg2, %c0_i32 : i32, i32, i32
  }
}

</mosaic_0001>

<llo_original>
// kernel: tpu_custom_call.1
$region0: #{tpu_custom_call.1}
  #allocation0 [shape = 'u32[]', space=smem, size = 0x4, offset = 0x4, fixed_abs, tag = 'smem constant byte address 0x4 - core index']
  #allocation1 [shape = 'u32[144,128]{1,0:T(1,128)}', space=vmem, size = 0x12000, scoped, tag = 'internal scratch']
  #allocation2 [shape = 'f32[1,1]{1,0:T(1,128)S(6)}', space=smem, size = 0x200, scoped, tag = 'scoped memory for tpu_custom_call.1']
  %s0 = inlined_call_operand.hbm [shape: f32[2,8,32], index: 0, kind: input, shape index: {}]
  %s1 = inlined_call_operand.hbm [shape: f32[32,256], index: 1, kind: input, shape index: {}]
  %s2 = inlined_call_operand.vmem [shape: f32[1,256], index: 2, kind: input, shape index: {}]
  %s3 = inlined_call_operand.vmem [shape: f32[1,32], index: 3, kind: input, shape index: {}]
  %s4 = inlined_call_operand.<no memory space> [shape: f32[1,1], index: 4, kind: input, shape index: {}]
  %s5 = inlined_call_operand.vmem [shape: f32[2,2,8,1], index: 5, kind: output, shape index: {0}]
  %s6 = inlined_call_operand.vmem [shape: f32[2,2,8,1], index: 6, kind: output, shape index: {1}]
  %s7 = inlined_call_operand.vmem [shape: f32[2,8,1], index: 7, kind: output, shape index: {2}]
  %8 = xla_tuple %s5, %s6, %s7
  %s9 = sld [smem:[#allocation0]]
  $region77: #{tpu_custom_call.1} parent=0
    _
  %s11 = ssub.s32 1, %s9
  %s12 = scalar_select 0, %s11, %s9
  %13 = sst [smem:[#allocation2]] %s4
  $region1: #{tpu_custom_call.1} parent=0
    #allocation3 [shape = 'u8[8192]{0}', space=vmem, size = 0x2000, scoped, tag = 'input window, operand 0']
    #allocation4 [shape = 's32[2]{0}', space=sflag, size = 0x8, scoped, tag = 'scoped memory for tpu_custom_call.1']
    #allocation5 [shape = 'u8[32768]{0}', space=vmem, size = 0x8000, scoped, tag = 'input window, operand 1']
    #allocation6 [shape = 's32[2]{0}', space=sflag, size = 0x8, scoped, tag = 'scoped memory for tpu_custom_call.1']
    %14 = vsyncpa [#allocation4], 0
    %s15 = scalar_lea.sflag [#allocation4], 1
    %16 = vsyncpa %s15, 0
    %17 = vsyncpa [#allocation6], 0
    %s18 = scalar_lea.sflag [#allocation6], 1
    %19 = vsyncpa %s18, 0
    loop: start=0, step=1, limit=6
    $region2: #{tpu_custom_call.1} parent=1 // loop_pre_header
      _
    $region3: #{tpu_custom_call.1} parent=1 // loop_header
      %s21 = sphi 0, %s25
      %p22 = scmp.ge.s32.totalorder %s21, 6
      %s28 = sphi 0, %s47
      %s29 = sphi 0, %s43
      %s30 = sphi 0, %s39
      %s31 = sphi 0, %s28
      %s32 = sphi 0, %s29
      %s33 = sphi 0, %s30
      %s34 = sphi 0, %s31
      %s35 = sphi 0, %s32
      %s36 = sphi 0, %s33
      %s52 = sphi 0, %s54
      %s55 = sphi 0, %s52
      %s56 = sphi 0, %s55
      %s72 = sphi 0, %s56
      %s78 = sphi 0, %s80
      %s81 = sphi 0, %s78
      %s82 = sphi 0, %s81
      %s98 = sphi 0, %s82
      %s104 = sphi 0, %s106
      %s107 = sphi 0, %s104
      %s108 = sphi 0, %s107
      %s124 = sphi 0, %s108
      %s128 = sphi 0, %s128
      %s130 = sphi 0, %s128
      %s131 = sphi 0, %s130
      %s145 = sphi 0, %s131
      %s149 = sphi 0, %s149
      %s151 = sphi 0, %s149
      %s152 = sphi 0, %s151
      %s166 = sphi 0, %s152
      %s176 = sphi 0, %s178
      %s179 = sphi 0, %s176
      %s180 = sphi 0, %s179
      %s196 = sphi 0, %s180
      %s206 = sphi 0, %s208
      %s209 = sphi 0, %s206
      %s210 = sphi 0, %s209
      %s226 = sphi 0, %s210
      %s234 = sphi 0, %s236
      %s237 = sphi 0, %s234
      %s238 = sphi 0, %s237
      %s254 = sphi 0, %s238
    $region4: #{tpu_custom_call.1} parent=1 // loop_header_branch
      %24 = sbr.rel (%p22) target = $region8
    $region5: #{tpu_custom_call.1} parent=1 // loop_body
      %s26 = ssub.s32 %s21, 1
      %s27 = ssub.s32 %s21, 2
      %s37 = sadd.s32 1, %s30
      %p38 = scmp.ge.s32.totalorder %s37, 1
      %s39 = scalar_select %p38, 0, %s37
      %s40 = sadd.s32 1, %s29
      %s41 = scalar_select %p38, %s40, %s29
      %p42 = scmp.ge.s32.totalorder %s41, 2
      %s43 = scalar_select %p42, 0, %s41
      %s44 = sadd.s32 1, %s28
      %s45 = scalar_select %p42, %s44, %s28
      %p46 = scmp.ge.s32.totalorder %s45, 2
      %s47 = scalar_select %p46, 0, %s45
      %s48 = ssub.s32 %s29, %s43
      %s49 = ssub.s32 %s30, %s39
      %s50 = sor.u32 %s48, %s49
      %p51 = scmp.eq.s32.totalorder %s50, 0
      %s53 = sadd.s32 %s52, 1
      %s54 = scalar_select %p51, %s52, %s53
      %p57 = pneg %p51
      %p58 = scmp.eq.s32.totalorder %s21, 3
      %p59 = por %p57, %p58
      %p60 = scmp.ne.s32.totalorder %s52, %s55
      %p61 = scmp.eq.s32.totalorder %s21, 0
      %p62 = por %p60, %p61
      %p63 = scmp.ne.s32.totalorder %s52, %s55
      %p64 = scmp.eq.s32.totalorder %s26, 3
      %p65 = por %p63, %p64
      %p66 = scmp.ne.s32.totalorder %s55, %s56
      %p67 = scmp.eq.s32.totalorder %s26, 0
      %p68 = por %p66, %p67
      %p69 = scmp.ne.s32.totalorder %s55, %s56
      %p70 = scmp.eq.s32.totalorder %s27, 3
      %p71 = por %p69, %p70
      %p73 = scmp.ne.s32.totalorder %s56, %s72
      %p74 = scmp.eq.s32.totalorder %s27, 0
      %p75 = por %p73, %p74
      %s76 = ssub.s32 %s28, %s47
      %p77 = scmp.eq.s32.totalorder %s76, 0
      %s79 = sadd.s32 %s78, 1
      %s80 = scalar_select %p77, %s78, %s79
      %p83 = pneg %p77
      %p84 = scmp.eq.s32.totalorder %s21, 3
      %p85 = por %p83, %p84
      %p86 = scmp.ne.s32.totalorder %s78, %s81
      %p87 = scmp.eq.s32.totalorder %s21, 0
      %p88 = por %p86, %p87
      %p89 = scmp.ne.s32.totalorder %s78, %s81
      %p90 = scmp.eq.s32.totalorder %s26, 3
      %p91 = por %p89, %p90
      %p92 = scmp.ne.s32.totalorder %s81, %s82
      %p93 = scmp.eq.s32.totalorder %s26, 0
      %p94 = por %p92, %p93
      %p95 = scmp.ne.s32.totalorder %s81, %s82
      %p96 = scmp.eq.s32.totalorder %s27, 3
      %p97 = por %p95, %p96
      %p99 = scmp.ne.s32.totalorder %s82, %s98
      %p100 = scmp.eq.s32.totalorder %s27, 0
      %p101 = por %p99, %p100
      %s102 = ssub.s32 %s28, %s47
      %p103 = scmp.eq.s32.totalorder %s102, 0
      %s105 = sadd.s32 %s104, 1
      %s106 = scalar_select %p103, %s104, %s105
      %p109 = pneg %p103
      %p110 = scmp.eq.s32.totalorder %s21, 3
      %p111 = por %p109, %p110
      %p112 = scmp.ne.s32.totalorder %s104, %s107
      %p113 = scmp.eq.s32.totalorder %s21, 0
      %p114 = por %p112, %p113
      %p115 = scmp.ne.s32.totalorder %s104, %s107
      %p116 = scmp.eq.s32.totalorder %s26, 3
      %p117 = por %p115, %p116
      %p118 = scmp.ne.s32.totalorder %s107, %s108
      %p119 = scmp.eq.s32.totalorder %s26, 0
      %p120 = por %p118, %p119
      %p121 = scmp.ne.s32.totalorder %s107, %s108
      %p122 = scmp.eq.s32.totalorder %s27, 3
      %p123 = por %p121, %p122
      %p125 = scmp.ne.s32.totalorder %s108, %s124
      %p126 = scmp.eq.s32.totalorder %s27, 0
      %p127 = por %p125, %p126
      %s129 = sadd.s32 %s128, 1
      %p132 = scmp.eq.s32.totalorder %s21, 3
      %p133 = scmp.ne.s32.totalorder %s128, %s130
      %p134 = scmp.eq.s32.totalorder %s21, 0
      %p135 = por %p133, %p134
      %p136 = scmp.ne.s32.totalorder %s128, %s130
      %p137 = scmp.eq.s32.totalorder %s26, 3
      %p138 = por %p136, %p137
      %p139 = scmp.ne.s32.totalorder %s130, %s131
      %p140 = scmp.eq.s32.totalorder %s26, 0
      %p141 = por %p139, %p140
      %p142 = scmp.ne.s32.totalorder %s130, %s131
      %p143 = scmp.eq.s32.totalorder %s27, 3
      %p144 = por %p142, %p143
      %p146 = scmp.ne.s32.totalorder %s131, %s145
      %p147 = scmp.eq.s32.totalorder %s27, 0
      %p148 = por %p146, %p147
      %s150 = sadd.s32 %s149, 1
      %p153 = scmp.eq.s32.totalorder %s21, 3
      %p154 = scmp.ne.s32.totalorder %s149, %s151
      %p155 = scmp.eq.s32.totalorder %s21, 0
      %p156 = por %p154, %p155
      %p157 = scmp.ne.s32.totalorder %s149, %s151
      %p158 = scmp.eq.s32.totalorder %s26, 3
      %p159 = por %p157, %p158
      %p160 = scmp.ne.s32.totalorder %s151, %s152
      %p161 = scmp.eq.s32.totalorder %s26, 0
      %p162 = por %p160, %p161
      %p163 = scmp.ne.s32.totalorder %s151, %s152
      %p164 = scmp.eq.s32.totalorder %s27, 3
      %p165 = por %p163, %p164
      %p167 = scmp.ne.s32.totalorder %s152, %s166
      %p168 = scmp.eq.s32.totalorder %s27, 0
      %p169 = por %p167, %p168
      %s170 = ssub.s32 %s28, %s47
      %s171 = ssub.s32 %s29, %s43
      %s172 = sor.u32 %s170, %s171
      %s173 = ssub.s32 %s30, %s39
      %s174 = sor.u32 %s172, %s173
      %p175 = scmp.eq.s32.totalorder %s174, 0
      %s177 = sadd.s32 %s176, 1
      %s178 = scalar_select %p175, %s176, %s177
      %p181 = pneg %p175
      %p182 = scmp.eq.s32.totalorder %s21, 3
      %p183 = por %p181, %p182
      %p184 = scmp.ne.s32.totalorder %s176, %s179
      %p185 = scmp.eq.s32.totalorder %s21, 0
      %p186 = por %p184, %p185
      %p187 = scmp.ne.s32.totalorder %s176, %s179
      %p188 = scmp.eq.s32.totalorder %s26, 3
      %p189 = por %p187, %p188
      %p190 = scmp.ne.s32.totalorder %s179, %s180
      %p191 = scmp.eq.s32.totalorder %s26, 0
      %p192 = por %p190, %p191
      %p193 = scmp.ne.s32.totalorder %s179, %s180
      %p194 = scmp.eq.s32.totalorder %s27, 3
      %p195 = por %p193, %p194
      %p197 = scmp.ne.s32.totalorder %s180, %s196
      %p198 = scmp.eq.s32.totalorder %s27, 0
      %p199 = por %p197, %p198
      %s200 = ssub.s32 %s28, %s47
      %s201 = ssub.s32 %s29, %s43
      %s202 = sor.u32 %s200, %s201
      %s203 = ssub.s32 %s30, %s39
      %s204 = sor.u32 %s202, %s203
      %p205 = scmp.eq.s32.totalorder %s204, 0
      %s207 = sadd.s32 %s206, 1
      %s208 = scalar_select %p205, %s206, %s207
      %p211 = pneg %p205
      %p212 = scmp.eq.s32.totalorder %s21, 3
      %p213 = por %p211, %p212
      %p214 = scmp.ne.s32.totalorder %s206, %s209
      %p215 = scmp.eq.s32.totalorder %s21, 0
      %p216 = por %p214, %p215
      %p217 = scmp.ne.s32.totalorder %s206, %s209
      %p218 = scmp.eq.s32.totalorder %s26, 3
      %p219 = por %p217, %p218
      %p220 = scmp.ne.s32.totalorder %s209, %s210
      %p221 = scmp.eq.s32.totalorder %s26, 0
      %p222 = por %p220, %p221
      %p223 = scmp.ne.s32.totalorder %s209, %s210
      %p224 = scmp.eq.s32.totalorder %s27, 3
      %p225 = por %p223, %p224
      %p227 = scmp.ne.s32.totalorder %s210, %s226
      %p228 = scmp.eq.s32.totalorder %s27, 0
      %p229 = por %p227, %p228
      %s230 = ssub.s32 %s29, %s43
      %s231 = ssub.s32 %s30, %s39
      %s232 = sor.u32 %s230, %s231
      %p233 = scmp.eq.s32.totalorder %s232, 0
      %s235 = sadd.s32 %s234, 1
      %s236 = scalar_select %p233, %s234, %s235
      %p239 = pneg %p233
      %p240 = scmp.eq.s32.totalorder %s21, 3
      %p241 = por %p239, %p240
      %p242 = scmp.ne.s32.totalorder %s234, %s237
      %p243 = scmp.eq.s32.totalorder %s21, 0
      %p244 = por %p242, %p243
      %p245 = scmp.ne.s32.totalorder %s234, %s237
      %p246 = scmp.eq.s32.totalorder %s26, 3
      %p247 = por %p245, %p246
      %p248 = scmp.ne.s32.totalorder %s237, %s238
      %p249 = scmp.eq.s32.totalorder %s26, 0
      %p250 = por %p248, %p249
      %p251 = scmp.ne.s32.totalorder %s237, %s238
      %p252 = scmp.eq.s32.totalorder %s27, 3
      %p253 = por %p251, %p252
      %p255 = scmp.ne.s32.totalorder %s238, %s254
      %p256 = scmp.eq.s32.totalorder %s27, 0
      %p257 = por %p255, %p256
      %p258 = scmp.le.s32.totalorder 1, %s21
      %p259 = scmp.lt.s32.totalorder %s21, 5
      %p260 = pnand %p258, %p259
      %p261 = pneg %p260
      // Predicated region
      $region9: #{tpu_custom_call.1} parent=5 // pred_check
        _
      $region10: #{tpu_custom_call.1} parent=5 // pred_check_branch
        %263 = sbr.rel (%p260) target = $region12
      $region11: #{tpu_custom_call.1} parent=5 // pred_region
        %s264 = ssub.s32 %s21, 1
        // Predicated region
        $region13: #{tpu_custom_call.1} parent=11 // pred_check
          %p265 = pneg %p141
        $region14: #{tpu_custom_call.1} parent=11 // pred_check_branch
          %267 = sbr.rel (%p265) target = $region16
        $region15: #{tpu_custom_call.1} parent=11 // pred_region
          _
        $region16: #{tpu_custom_call.1} parent=11 // pred_fallthru
          _
        // Predicated region
        $region17: #{tpu_custom_call.1} parent=11 // pred_check
          %p268 = pneg %p162
        $region18: #{tpu_custom_call.1} parent=11 // pred_check_branch
          %270 = sbr.rel (%p268) target = $region20
        $region19: #{tpu_custom_call.1} parent=11 // pred_region
          _
        $region20: #{tpu_custom_call.1} parent=11 // pred_fallthru
          _
      $region12: #{tpu_custom_call.1} parent=5 // pred_fallthru
        _
      %p271 = scmp.lt.s32.totalorder %s21, 4
      // Predicated region
      $region21: #{tpu_custom_call.1} parent=5 // pred_check
        %p272 = pneg %p271
      $region22: #{tpu_custom_call.1} parent=5 // pred_check_branch
        %274 = sbr.rel (%p272) target = $region24
      $region23: #{tpu_custom_call.1} parent=5 // pred_region
        // Predicated region
        $region25: #{tpu_custom_call.1} parent=23 // pred_check
          %p275 = pneg %p62
        $region26: #{tpu_custom_call.1} parent=23 // pred_check_branch
          %277 = sbr.rel (%p275) target = $region28
        $region27: #{tpu_custom_call.1} parent=23 // pred_region
          %s278 = sand.u32 %s52, 1
          %s279 = scalar_lea.sflag [#allocation4], %s278
          %s280 = sand.u32 %s52, 1
          %s281 = smul.addr %s280, 8
          %s282 = scalar_lea.vmem [#allocation3], %s281
          %s284 = ssub.s32 128, 128
          %285 = vsyncadd %s279, %s284
          %s286 = sadd.s32 %s30, %s29
          %s287 = smul.addr %s286, 128
          %s288 = scalar_lea.hbm %s0, %s287
          %s290 = sshll.u32 %s282, 4
          %s291 = int_to_ptr.vmem [resolvable:$true] %s290
          %293 = dma.hbm_to_vmem [thread:$0]  %s288, 128, %s291, %s279
        $region28: #{tpu_custom_call.1} parent=23 // pred_fallthru
          _
        // Predicated region
        $region29: #{tpu_custom_call.1} parent=23 // pred_check
          %p294 = pneg %p88
        $region30: #{tpu_custom_call.1} parent=23 // pred_check_branch
          %296 = sbr.rel (%p294) target = $region32
        $region31: #{tpu_custom_call.1} parent=23 // pred_region
          %s297 = sand.u32 %s78, 1
          %s298 = scalar_lea.sflag [#allocation6], %s297
          %s299 = sand.u32 %s78, 1
          %s300 = smul.addr %s299, 32
          %s301 = scalar_lea.vmem [#allocation5], %s300
          %s303 = ssub.s32 512, 512
          %304 = vsyncadd %s298, %s303
          %s305 = smul.addr %s28, 128
          %s306 = scalar_lea.hbm %s1, %s305
          %s307 = sshll.u32 %s301, 4
          %s308 = int_to_ptr.vmem [resolvable:$true] %s307
          %313 = dma.hbm_to_vmem [thread:$0]  %s306, 512, %s308, %s298, 256, 128, 8
        $region32: #{tpu_custom_call.1} parent=23 // pred_fallthru
          _
        // Predicated region
        $region33: #{tpu_custom_call.1} parent=23 // pred_check
          %p314 = pneg %p114
        $region34: #{tpu_custom_call.1} parent=23 // pred_check_branch
          %316 = sbr.rel (%p314) target = $region36
        $region35: #{tpu_custom_call.1} parent=23 // pred_region
          %p317 = scmp.lt.s32.totalorder %s28, 1
          %s318 = scalar_select %p317, %s28, 1
          %s319 = scalar_lea.vmem %s2, %s318
        $region36: #{tpu_custom_call.1} parent=23 // pred_fallthru
          _
      $region24: #{tpu_custom_call.1} parent=5 // pred_fallthru
        _
      %p320 = scmp.le.s32.totalorder 1, %s21
      %p321 = scmp.lt.s32.totalorder %s21, 5
      %p322 = pnand %p320, %p321
      %p323 = pneg %p322
      // Predicated region
      $region37: #{tpu_custom_call.1} parent=5 // pred_check
        _
      $region38: #{tpu_custom_call.1} parent=5 // pred_check_branch
        %325 = sbr.rel (%p322) target = $region40
      $region39: #{tpu_custom_call.1} parent=5 // pred_region
        %s326 = ssub.s32 %s21, 1
        %s327 = sand.u32 %s55, 1
        %s328 = scalar_lea.sflag [#allocation4], %s327
        %s329 = sand.u32 %s55, 1
        %s330 = smul.addr %s329, 8
        %s331 = scalar_lea.vmem [#allocation3], %s330
        // Predicated region
        $region41: #{tpu_custom_call.1} parent=39 // pred_check
          %p332 = pneg %p68
        $region42: #{tpu_custom_call.1} parent=39 // pred_check_branch
          %334 = sbr.rel (%p332) target = $region44
        $region43: #{tpu_custom_call.1} parent=39 // pred_region
          %335 = dma.done %s328, 128
        $region44: #{tpu_custom_call.1} parent=39 // pred_fallthru
          _
        %s336 = sand.u32 %s81, 1
        %s337 = scalar_lea.sflag [#allocation6], %s336
        %s338 = sand.u32 %s81, 1
        %s339 = smul.addr %s338, 32
        %s340 = scalar_lea.vmem [#allocation5], %s339
        // Predicated region
        $region45: #{tpu_custom_call.1} parent=39 // pred_check
          %p341 = pneg %p94
        $region46: #{tpu_custom_call.1} parent=39 // pred_check_branch
          %343 = sbr.rel (%p341) target = $region48
        $region47: #{tpu_custom_call.1} parent=39 // pred_region
          %344 = dma.done %s337, 512
        $region48: #{tpu_custom_call.1} parent=39 // pred_fallthru
          _
        %s345 = sand.u32 %s55, 1
        %s346 = scalar_lea.sflag [#allocation4], %s345
        %s347 = sand.u32 %s55, 1
        %s348 = smul.addr %s347, 8
        %s349 = scalar_lea.vmem [#allocation3], %s348
        %p350 = pneg %p68
        %p351 = pneg %p65
        %s352 = sand.u32 %s81, 1
        %s353 = scalar_lea.sflag [#allocation6], %s352
        %s354 = sand.u32 %s81, 1
        %s355 = smul.addr %s354, 32
        %s356 = scalar_lea.vmem [#allocation5], %s355
        %p357 = pneg %p94
        %p358 = pneg %p91
        %p359 = scmp.lt.s32.totalorder %s31, 1
        %s360 = scalar_select %p359, %s31, 1
        %s361 = scalar_lea.vmem %s2, %s360
        %p362 = pneg %p120
        %p363 = pneg %p117
        %p364 = pneg %p141
        %p365 = pneg %p138
        %p366 = pneg %p162
        %p367 = pneg %p159
        %p368 = pneg %p192
        %p369 = pneg %p189
        %p370 = scmp.lt.s32.totalorder %s31, 1
        %s371 = scalar_select %p370, %s31, 1
        %p372 = scmp.lt.s32.totalorder %s32, 1
        %s373 = scalar_select %p372, %s32, 1
        %p374 = scmp.lt.s32.totalorder %s33, 0
        %s375 = scalar_select %p374, %s33, 0
        %s376 = sadd.s32 %s375, %s373
        %s377 = smul.addr %s371, 2
        %s378 = sadd.s32 %s376, %s377
        %s379 = smul.addr %s378, 8
        %s380 = scalar_lea.vmem %s5, %s379
        %p381 = pneg %p222
        %p382 = pneg %p219
        %p383 = scmp.lt.s32.totalorder %s31, 1
        %s384 = scalar_select %p383, %s31, 1
        %p385 = scmp.lt.s32.totalorder %s32, 1
        %s386 = scalar_select %p385, %s32, 1
        %p387 = scmp.lt.s32.totalorder %s33, 0
        %s388 = scalar_select %p387, %s33, 0
        %s389 = sadd.s32 %s388, %s386
        %s390 = smul.addr %s384, 2
        %s391 = sadd.s32 %s389, %s390
        %s392 = smul.addr %s391, 8
        %s393 = scalar_lea.vmem %s6, %s392
        %p394 = pneg %p250
        %p395 = pneg %p247
        %p396 = scmp.lt.s32.totalorder %s32, 1
        %s397 = scalar_select %p396, %s32, 1
        %p398 = scmp.lt.s32.totalorder %s33, 0
        %s399 = scalar_select %p398, %s33, 0
        %s400 = sadd.s32 %s399, %s397
        %s401 = smul.addr %s400, 8
        %s402 = scalar_lea.vmem %s7, %s401
        %p403 = scmp.lt.s32.totalorder %s31, 1
        %s404 = scalar_select %p403, %s31, 1
        %s405 = scalar_lea.vmem %s2, %s404
        %p406 = scmp.lt.s32.totalorder %s31, 1
        %s407 = scalar_select %p406, %s31, 1
        %p408 = scmp.lt.s32.totalorder %s32, 1
        %s409 = scalar_select %p408, %s32, 1
        %p410 = scmp.lt.s32.totalorder %s33, 0
        %s411 = scalar_select %p410, %s33, 0
        %s412 = sadd.s32 %s411, %s409
        %s413 = smul.addr %s407, 2
        %s414 = sadd.s32 %s412, %s413
        %s415 = smul.addr %s414, 8
        %s416 = scalar_lea.vmem %s5, %s415
        %p417 = scmp.lt.s32.totalorder %s31, 1
        %s418 = scalar_select %p417, %s31, 1
        %p419 = scmp.lt.s32.totalorder %s32, 1
        %s420 = scalar_select %p419, %s32, 1
        %p421 = scmp.lt.s32.totalorder %s33, 0
        %s422 = scalar_select %p421, %s33, 0
        %s423 = sadd.s32 %s422, %s420
        %s424 = smul.addr %s418, 2
        %s425 = sadd.s32 %s423, %s424
        %s426 = smul.addr %s425, 8
        %s427 = scalar_lea.vmem %s6, %s426
        %p428 = scmp.lt.s32.totalorder %s32, 1
        %s429 = scalar_select %p428, %s32, 1
        %p430 = scmp.lt.s32.totalorder %s33, 0
        %s431 = scalar_select %p430, %s33, 0
        %s432 = sadd.s32 %s431, %s429
        %s433 = smul.addr %s432, 8
        %s434 = scalar_lea.vmem %s7, %s433
        %v435 = vld [vmem:[%s331] sm:$0xff]
        %v436 = vld [vmem:[%s340] sm:$0xff]
        %v437 = vld [vmem:[%s340 + $0x8] sm:$0xff]
        %v438 = vld [vmem:[%s340 + $0x10] sm:$0xff]
        %v439 = vld [vmem:[%s340 + $0x18] sm:$0xff]
        %v440 = vld [vmem:[%s405] sm:$0x1]
        %v442 = vlaneseq
        %v443 = vshrl.u32 %v442, 7
        %v444 = vsub.s32 0, %v443
        %v445 = vrot.slane %v440, %v444
        %vm447 = vcmask 261120
        %v449 = vsel %vm447, %v435, 0
        %451 = vmatprep.subr.mxu0 0.0
        %452 = vmatpush1.msra.mxu0 0.0
        %453 = vmatprep.subr.mxu0 0.0
        %454 = vmatpush1.msra.mxu0 0.0
        %455 = vmatprep.subr.mxu0 0.0
        %456 = vmatpush1.msra.mxu0 0.0
        %457 = vmatprep.subr.mxu0 0.0
        %458 = vmatpush1.msra.mxu0 0.0
        %459 = vmatprep.subr.mxu0 0.0
        %460 = vmatpush1.msra.mxu0 0.0
        %461 = vmatprep.subr.mxu0 0.0
        %462 = vmatpush1.msra.mxu0 0.0
        %463 = vmatprep.subr.mxu0 0.0
        %464 = vmatpush1.msra.mxu0 0.0
        %465 = vmatprep.subr.mxu0 0.0
        %466 = vmatpush1.msra.mxu0 0.0
        %467 = vmatprep.subr.mxu0 0.0
        %468 = vmatpush1.msra.mxu0 0.0
        %469 = vmatprep.subr.mxu0 0.0
        %470 = vmatpush1.msra.mxu0 0.0
        %471 = vmatprep.subr.mxu0 0.0
        %472 = vmatpush1.msra.mxu0 0.0
        %473 = vmatprep.subr.mxu0 0.0
        %474 = vmatpush1.msra.mxu0 0.0
        %475 = vmatprep.subr.mxu0 0.0
        %476 = vmatpush1.msra.mxu0 %v439
        %477 = vmatprep.subr.mxu0 0.0
        %478 = vmatpush1.msra.mxu0 %v438
        %479 = vmatprep.subr.mxu0 0.0
        %480 = vmatpush1.msra.mxu0 %v437
        %481 = vmatprep.subr.mxu0 0.0
        %482 = vmatpush1.msra.mxu0 %v436
        %483 = vmatprep.subr.mxu0 0.0
        %484 = vmatpush2.msra.mxu0 0.0
        %485 = vmatprep.subr.mxu0 0.0
        %486 = vmatpush2.msra.mxu0 0.0
        %487 = vmatprep.subr.mxu0 0.0
        %488 = vmatpush2.msra.mxu0 0.0
        %489 = vmatprep.subr.mxu0 0.0
        %490 = vmatpush2.msra.mxu0 0.0
        %491 = vmatprep.subr.mxu0 0.0
        %492 = vmatpush2.msra.mxu0 0.0
        %493 = vmatprep.subr.mxu0 0.0
        %494 = vmatpush2.msra.mxu0 0.0
        %495 = vmatprep.subr.mxu0 0.0
        %496 = vmatpush2.msra.mxu0 0.0
        %497 = vmatprep.subr.mxu0 0.0
        %498 = vmatpush2.msra.mxu0 0.0
        %499 = vmatprep.subr.mxu0 0.0
        %500 = vmatpush2.msra.mxu0 0.0
        %501 = vmatprep.subr.mxu0 0.0
        %502 = vmatpush2.msra.mxu0 0.0
        %503 = vmatprep.subr.mxu0 0.0
        %504 = vmatpush2.msra.mxu0 0.0
        %505 = vmatprep.subr.mxu0 0.0
        %506 = vmatpush2.msra.mxu0 0.0
        %507 = vmatprep.subr.mxu0 0.0
        %508 = vmatpush2.msra.mxu0 0.0
        %509 = vmatprep.subr.mxu0 0.0
        %510 = vmatpush2.msra.mxu0 0.0
        %511 = vmatprep.subr.mxu0 0.0
        %512 = vmatpush2.msra.mxu0 0.0
        %513 = vmatprep.subr.mxu0 0.0
        %514 = vmatpush2.msra.mxu0 0.0
        %515 = vmatprep.mubr.f32.mxu0 0.0
        %516 = vmatmul.mubr.f32.gmra.mxu0 %v449
        %v517 = vpop.f32.mrf.mxu0
        %v518 = vadd.f32 %v445, %v517
        %v519 = vpop.f32.mrf.mxu0
        %520 = vdwg.mxu0
        %521 = vmax.xlane.f32.xlu0 %v518
        %v522 = vpop.xlane.xlu0 %521
        %vm523 = vcmask 7168
        %524 = vst.msk [vmem:[%s416] sm:$0xff] %vm523, %v522
        %v525 = vsub.f32 %v518, %v522
        %v526 = vmul.f32 %v525, 1.442695
        %v527 = vpow.pop %v526
        %528 = vadd.xlane.f32.xlu0 %v527
        %v529 = vpop.xlane.xlu0 %528
        %530 = vst.msk [vmem:[%s427] sm:$0xff] %vm523, %v529
        %v531 = vld [vmem:[%s3] sm:$0x1]
        %v533 = vlaneseq
        %v534 = vshrl.u32 %v533, 7
        %v535 = vsub.s32 0, %v534
        %v536 = vrot.slane %v531, %v535
        %v538 = vmul.f32 %v435, %v536
        %v539 = vsel %vm447, %v538, 0.0
        %540 = vadd.xlane.f32.xlu0 %v539
        %v541 = vpop.xlane.xlu0 %540
        %s542 = sld [smem:[#allocation2]]
        %v543 = vstv %s542
        %v544 = vadd.f32 %v541, %v543
        %v545 = vxor.u32 %v544, 2147483648
        %v546 = vmul.f32 %v545, 1.442695
        %v547 = vpow.pop %v546
        %v548 = vadd.f32 %v547, 1.0
        %v549 = vrcp.pop %v548
        %v550 = vmul.f32 1.0, %v549
        %551 = vst.msk [vmem:[%s434] sm:$0xff] %vm523, %v550
        %p552 = scmp.lt.s32.totalorder %s31, 1
        %s553 = scalar_select %p552, %s31, 1
        %p554 = scmp.lt.s32.totalorder %s32, 1
        %s555 = scalar_select %p554, %s32, 1
        %p556 = scmp.lt.s32.totalorder %s33, 0
        %s557 = scalar_select %p556, %s33, 0
        %s558 = sadd.s32 %s557, %s555
        %s559 = smul.addr %s553, 2
        %s560 = sadd.s32 %s558, %s559
        %s561 = smul.addr %s560, 8
        %s562 = scalar_lea.vmem %s5, %s561
        %p563 = scmp.lt.s32.totalorder %s31, 1
        %s564 = scalar_select %p563, %s31, 1
        %p565 = scmp.lt.s32.totalorder %s32, 1
        %s566 = scalar_select %p565, %s32, 1
        %p567 = scmp.lt.s32.totalorder %s33, 0
        %s568 = scalar_select %p567, %s33, 0
        %s569 = sadd.s32 %s568, %s566
        %s570 = smul.addr %s564, 2
        %s571 = sadd.s32 %s569, %s570
        %s572 = smul.addr %s571, 8
        %s573 = scalar_lea.vmem %s6, %s572
        %p574 = scmp.lt.s32.totalorder %s32, 1
        %s575 = scalar_select %p574, %s32, 1
        %p576 = scmp.lt.s32.totalorder %s33, 0
        %s577 = scalar_select %p576, %s33, 0
        %s578 = sadd.s32 %s577, %s575
        %s579 = smul.addr %s578, 8
        %s580 = scalar_lea.vmem %s7, %s579
        // Predicated region
        $region49: #{tpu_custom_call.1} parent=39 // pred_check
          %p581 = pneg %p189
        $region50: #{tpu_custom_call.1} parent=39 // pred_check_branch
          %583 = sbr.rel (%p581) target = $region52
        $region51: #{tpu_custom_call.1} parent=39 // pred_region
          _
        $region52: #{tpu_custom_call.1} parent=39 // pred_fallthru
          _
        // Predicated region
        $region53: #{tpu_custom_call.1} parent=39 // pred_check
          %p584 = pneg %p219
        $region54: #{tpu_custom_call.1} parent=39 // pred_check_branch
          %586 = sbr.rel (%p584) target = $region56
        $region55: #{tpu_custom_call.1} parent=39 // pred_region
          _
        $region56: #{tpu_custom_call.1} parent=39 // pred_fallthru
          _
        // Predicated region
        $region57: #{tpu_custom_call.1} parent=39 // pred_check
          %p587 = pneg %p247
        $region58: #{tpu_custom_call.1} parent=39 // pred_check_branch
          %589 = sbr.rel (%p587) target = $region60
        $region59: #{tpu_custom_call.1} parent=39 // pred_region
          _
        $region60: #{tpu_custom_call.1} parent=39 // pred_fallthru
          _
      $region40: #{tpu_custom_call.1} parent=5 // pred_fallthru
        _
      %p590 = scmp.le.s32.totalorder 2, %s21
      // Predicated region
      $region61: #{tpu_custom_call.1} parent=5 // pred_check
        %p591 = pneg %p590
      $region62: #{tpu_custom_call.1} parent=5 // pred_check_branch
        %593 = sbr.rel (%p591) target = $region64
      $region63: #{tpu_custom_call.1} parent=5 // pred_region
        %s594 = ssub.s32 %s21, 2
        // Predicated region
        $region65: #{tpu_custom_call.1} parent=63 // pred_check
          %p595 = pneg %p195
        $region66: #{tpu_custom_call.1} parent=63 // pred_check_branch
          %597 = sbr.rel (%p595) target = $region68
        $region67: #{tpu_custom_call.1} parent=63 // pred_region
          %p598 = scmp.lt.s32.totalorder %s34, 1
          %s599 = scalar_select %p598, %s34, 1
          %p600 = scmp.lt.s32.totalorder %s35, 1
          %s601 = scalar_select %p600, %s35, 1
          %p602 = scmp.lt.s32.totalorder %s36, 0
          %s603 = scalar_select %p602, %s36, 0
          %s604 = sadd.s32 %s603, %s601
          %s605 = smul.addr %s599, 2
          %s606 = sadd.s32 %s604, %s605
          %s607 = smul.addr %s606, 8
          %s608 = scalar_lea.vmem %s5, %s607
        $region68: #{tpu_custom_call.1} parent=63 // pred_fallthru
          _
        // Predicated region
        $region69: #{tpu_custom_call.1} parent=63 // pred_check
          %p609 = pneg %p225
        $region70: #{tpu_custom_call.1} parent=63 // pred_check_branch
          %611 = sbr.rel (%p609) target = $region72
        $region71: #{tpu_custom_call.1} parent=63 // pred_region
          %p612 = scmp.lt.s32.totalorder %s34, 1
          %s613 = scalar_select %p612, %s34, 1
          %p614 = scmp.lt.s32.totalorder %s35, 1
          %s615 = scalar_select %p614, %s35, 1
          %p616 = scmp.lt.s32.totalorder %s36, 0
          %s617 = scalar_select %p616, %s36, 0
          %s618 = sadd.s32 %s617, %s615
          %s619 = smul.addr %s613, 2
          %s620 = sadd.s32 %s618, %s619
          %s621 = smul.addr %s620, 8
          %s622 = scalar_lea.vmem %s6, %s621
        $region72: #{tpu_custom_call.1} parent=63 // pred_fallthru
          _
        // Predicated region
        $region73: #{tpu_custom_call.1} parent=63 // pred_check
          %p623 = pneg %p253
        $region74: #{tpu_custom_call.1} parent=63 // pred_check_branch
          %625 = sbr.rel (%p623) target = $region76
        $region75: #{tpu_custom_call.1} parent=63 // pred_region
          %p626 = scmp.lt.s32.totalorder %s35, 1
          %s627 = scalar_select %p626, %s35, 1
          %p628 = scmp.lt.s32.totalorder %s36, 0
          %s629 = scalar_select %p628, %s36, 0
          %s630 = sadd.s32 %s629, %s627
          %s631 = smul.addr %s630, 8
          %s632 = scalar_lea.vmem %s7, %s631
        $region76: #{tpu_custom_call.1} parent=63 // pred_fallthru
          _
      $region64: #{tpu_custom_call.1} parent=5 // pred_fallthru
        _
    $region6: #{tpu_custom_call.1} parent=1 // loop_footer
      %s25 = sadd.s32 1, %s21
    $region7: #{tpu_custom_call.1} parent=1 // loop_footer_branch
      %20 = sbr.rel target = $region3
    $region8: #{tpu_custom_call.1} parent=1 // loop_exit
      _
    %633 = vsyncpa [#allocation4], 1
    %s634 = scalar_lea.sflag [#allocation4], 1
    %635 = vsyncpa %s634, 1
    %636 = vsyncpa [#allocation6], 1
    %s637 = scalar_lea.sflag [#allocation6], 1
    %638 = vsyncpa %s637, 1

</llo_original>
